<compile_context>
chip_gen: v5e
topology: v5e:2x2
jax: 0.10.0
libtpu: 0.0.40
codegen_flags: <defaults>
</compile_context>

<pallas_src>
import functools

import jax
import jax.numpy as jnp
from jax.experimental import pallas as pl
from jax.experimental.pallas import tpu as pltpu

LANES = 128
SUBLANES = 8
MAX_TILE_ROWS = 4096   # 4096x128 f32 = 2 MiB per x tile; sweep 2048/4096.
NUM_CORES = 2          # sharded across TensorCores on v7x; serial elsewhere.


def _cdiv(a, b):
    return -(-a // b)


def _round_up(a, b):
    return _cdiv(a, b) * b


def _wbce_kernel(x_ref, t_ref, out_ref, *,
                 pos_weight, neg_weight, n_valid, n_total):
    i = pl.program_id(1)

    @pl.when(i == 0)
    def _():
        out_ref[...] = jnp.zeros_like(out_ref)

    x = x_ref[...].astype(jnp.float32)
    t = t_ref[...].astype(jnp.float32)

    # Numerically stable BCE with logits:
    #   loss = max(x, 0) - x * t + log(1 + exp(-|x|))
    bce = jnp.maximum(x, 0.0) - x * t + jnp.log1p(jnp.exp(-jnp.abs(x)))

    # Exact semantics of the PyTorch masked in-place scaling: t==1 -> pos,
    # t==0 -> neg, soft labels (0<t<1) keep weight 1.0.  The extra
    # compare/select is free on this HBM-bound kernel.
    w = jnp.where(t == 1.0, jnp.float32(pos_weight), jnp.float32(1.0)) \
        * jnp.where(t == 0.0, jnp.float32(neg_weight), jnp.float32(1.0))
    contrib = bce * w

    if n_valid != n_total:  # static: only emit the tail mask when padded.
        # NOTE: int32 flat index; fine for < 2**31 elements.
        c = pl.program_id(0)
        tile_idx = c * pl.num_programs(1) + i
        tile_rows, lanes = contrib.shape
        base = tile_idx * (tile_rows * lanes)
        ridx = jax.lax.broadcasted_iota(jnp.int32, contrib.shape, 0)
        lidx = jax.lax.broadcasted_iota(jnp.int32, contrib.shape, 1)
        gidx = base + ridx * lanes + lidx
        contrib = jnp.where(gidx < n_valid, contrib, jnp.float32(0.0))

    # Row-group reduction (pure VPU, vreg-wise adds) into the resident
    # (8, 128) accumulator block; cross-lane reduce happens once, outside.
    out_ref[...] += jnp.sum(contrib.reshape(-1, SUBLANES, LANES), axis=0)


def weighted_bce_loss(inputs, targets, pos_weight=1.8, neg_weight=1.0):
    """Weighted BCE-with-logits mean loss (scalar), computed in Pallas."""
    assert inputs.shape == targets.shape
    n_valid = int(inputs.size)

    # Stream both operands in their native dtypes; all casting is in-kernel.
    x = inputs.reshape(-1)
    t = targets.reshape(-1)

    # Choose tiling: rows padded to sublane multiples, tile as large as
    # possible (<= MAX_TILE_ROWS), total rows a multiple of cores*tile_rows.
    rows_min = _round_up(_cdiv(n_valid, LANES), SUBLANES)
    tile_rows = min(MAX_TILE_ROWS,
                    _round_up(_cdiv(rows_min, NUM_CORES), SUBLANES))
    total_rows = _round_up(rows_min, NUM_CORES * tile_rows)
    tiles_per_core = total_rows // (NUM_CORES * tile_rows)
    n_total = total_rows * LANES

    pad = n_total - n_valid
    if pad:
        # TODO(synk): padding materializes one extra copy of the operands;
        # unavoidable without a separate tail pass when N % tile != 0.
        x = jnp.pad(x, (0, pad))
        t = jnp.pad(t, (0, pad))
    x = x.reshape(total_rows, LANES)
    t = t.reshape(total_rows, LANES)

    kernel = functools.partial(
        _wbce_kernel,
        pos_weight=float(pos_weight),
        neg_weight=float(neg_weight),
        n_valid=n_valid,
        n_total=n_total,
    )

    in_tile = pl.BlockSpec((tile_rows, LANES),
                           lambda c, i: (c * tiles_per_core + i, 0))

    partials = pl.pallas_call(
        kernel,
        out_shape=jax.ShapeDtypeStruct((NUM_CORES, SUBLANES, LANES),
                                       jnp.float32),
        grid_spec=pltpu.PrefetchScalarGridSpec(
            num_scalar_prefetch=0,
            grid=(NUM_CORES, tiles_per_core),
            in_specs=[in_tile, in_tile],
            out_specs=pl.BlockSpec((None, SUBLANES, LANES),
                                   lambda c, i: (c, 0, 0)),
        ),
        compiler_params=pltpu.CompilerParams(
            dimension_semantics=("parallel", "arbitrary"),
            vmem_limit_bytes=32 << 20),
    )(x, t)

    # Final cross-lane/core reduce + mean (tiny: NUM_CORES*8*128 f32).
    return jnp.sum(partials) / jnp.float32(n_valid)


def _reference_loss(inputs, targets, pos_weight=1.8, neg_weight=1.0):
    x = inputs.astype(jnp.float32)
    t = targets.astype(jnp.float32)
    bce = jnp.maximum(x, 0.0) - x * t + jnp.log1p(jnp.exp(-jnp.abs(x)))
    bce = jnp.where(t == 1.0, bce * pos_weight, bce)
    bce = jnp.where(t == 0.0, bce * neg_weight, bce)
    return jnp.mean(bce)


if __name__ == "__main__":
    key = jax.random.PRNGKey(0)
    k1, k2 = jax.random.split(key)

    # NCHW-shaped logits and binary targets (small shapes).
    B, C, H, W = 2, 4, 16, 16
    logits = jax.random.normal(k1, (B, C, H, W), dtype=jnp.float32)
    targets = (jax.random.uniform(k2, (B, C, H, W)) > 0.5).astype(jnp.float32)

    loss = weighted_bce_loss(logits, targets, pos_weight=1.8, neg_weight=1.0)
    loss = jax.block_until_ready(loss)

    ref = _reference_loss(logits, targets, pos_weight=1.8, neg_weight=1.0)
    assert jnp.allclose(loss, ref, rtol=1e-5, atol=1e-5), (loss, ref)

    # Also exercise a padded (non tile-multiple) size to cover the in-kernel
    # tail mask path.
    logits2 = jax.random.normal(k1, (3, 5, 7, 11), dtype=jnp.float32)
    targets2 = (jax.random.uniform(k2, (3, 5, 7, 11)) > 0.5).astype(jnp.float32)
    loss2 = jax.block_until_ready(weighted_bce_loss(logits2, targets2))
    ref2 = _reference_loss(logits2, targets2)
    assert jnp.allclose(loss2, ref2, rtol=1e-5, atol=1e-5), (loss2, ref2)

    print("KERNEL_OK")
</pallas_src>

<mosaic_0001>
module attributes {stable_mosaic.version = 11 : i64} {
  func.func @_wbce_kernel(%arg0: i32, %arg1: i32, %arg2: memref<8x128xf32, #tpu.memory_space<vmem>>, %arg3: memref<8x128xf32, #tpu.memory_space<vmem>>, %arg4: memref<1x8x128xf32, #tpu.memory_space<vmem>>) attributes {dimension_semantics = [#tpu.dimension_semantics<parallel>, #tpu.dimension_semantics<arbitrary>], iteration_bounds = array<i64: 2, 1>, scalar_prefetch = 0 : i64, scratch_operands = 0 : i64, tpu.core_type = #tpu.core_type<tc>, window_params = [{transform_indices = @transform_0, window_bounds = array<i64: 8, 128>}, {transform_indices = @transform_1, window_bounds = array<i64: 8, 128>}, {transform_indices = @transform_2, window_bounds = array<i64: 1, 8, 128>}]} {
    %c0_i32 = arith.constant 0 : i32
    %0 = arith.cmpi eq, %arg1, %c0_i32 : i32
    %1 = arith.extui %0 : i1 to i32
    %c0_i32_0 = arith.constant 0 : i32
    %2 = arith.cmpi ne, %1, %c0_i32_0 : i32
    scf.if %2 {
      %cst_18 = arith.constant 0.000000e+00 : f32
      %35 = vector.broadcast %cst_18 : f32 to vector<8x128xf32>
      %c0_19 = arith.constant 0 : index
      %c0_20 = arith.constant 0 : index
      %c0_21 = arith.constant 0 : index
      %36 = vector.load %arg4[%c0_19, %c0_20, %c0_21] : memref<1x8x128xf32, #tpu.memory_space<vmem>>, vector<1x8x128xf32>
      %37 = vector.shape_cast %36 : vector<1x8x128xf32> to vector<8x128xf32>
      %38 = vector.shape_cast %35 : vector<8x128xf32> to vector<1x8x128xf32>
      tpu.vector_store %arg4[%c0_19, %c0_20, %c0_21], %38 {strides = array<i32>} : memref<1x8x128xf32, #tpu.memory_space<vmem>>, vector<1x8x128xf32>,
    } else {
    }
    %c0 = arith.constant 0 : index
    %c0_1 = arith.constant 0 : index
    %3 = vector.load %arg2[%c0, %c0_1] : memref<8x128xf32, #tpu.memory_space<vmem>>, vector<8x128xf32>
    %c0_2 = arith.constant 0 : index
    %c0_3 = arith.constant 0 : index
    %4 = vector.load %arg3[%c0_2, %c0_3] : memref<8x128xf32, #tpu.memory_space<vmem>>, vector<8x128xf32>
    %cst = arith.constant 0.000000e+00 : f32
    %5 = vector.broadcast %cst : f32 to vector<8x128xf32>
    %6 = arith.maximumf %3, %5 : vector<8x128xf32>
    %7 = arith.mulf %3, %4 : vector<8x128xf32>
    %8 = arith.subf %6, %7 : vector<8x128xf32>
    %9 = math.absf %3 : vector<8x128xf32>
    %cst_4 = arith.constant 0.000000e+00 : f32
    %10 = vector.broadcast %cst_4 : f32 to vector<8x128xf32>
    %11 = arith.subf %10, %9 : vector<8x128xf32>
    %12 = math.exp %11 : vector<8x128xf32>
    %13 = math.log1p %12 : vector<8x128xf32>
    %14 = arith.addf %8, %13 : vector<8x128xf32>
    %cst_5 = arith.constant 1.000000e+00 : f32
    %15 = vector.broadcast %cst_5 : f32 to vector<8x128xf32>
    %16 = arith.cmpf oeq, %4, %15 : vector<8x128xf32>
    %cst_6 = arith.constant 1.800000e+00 : f32
    %cst_7 = arith.constant 1.000000e+00 : f32
    %17 = vector.broadcast %cst_6 : f32 to vector<8x128xf32>
    %18 = vector.broadcast %cst_7 : f32 to vector<8x128xf32>
    %19 = arith.select %16, %17, %18 : vector<8x128xi1>, vector<8x128xf32>
    %cst_8 = arith.constant 0.000000e+00 : f32
    %20 = vector.broadcast %cst_8 : f32 to vector<8x128xf32>
    %21 = arith.cmpf oeq, %4, %20 : vector<8x128xf32>
    %cst_9 = arith.constant 1.000000e+00 : f32
    %cst_10 = arith.constant 1.000000e+00 : f32
    %22 = vector.broadcast %cst_9 : f32 to vector<8x128xf32>
    %23 = vector.broadcast %cst_10 : f32 to vector<8x128xf32>
    %24 = arith.select %21, %22, %23 : vector<8x128xi1>, vector<8x128xf32>
    %25 = arith.mulf %19, %24 : vector<8x128xf32>
    %26 = arith.mulf %14, %25 : vector<8x128xf32>
    %c0_11 = arith.constant 0 : index
    %c0_12 = arith.constant 0 : index
    %c0_13 = arith.constant 0 : index
    %27 = vector.load %arg4[%c0_11, %c0_12, %c0_13] : memref<1x8x128xf32, #tpu.memory_space<vmem>>, vector<1x8x128xf32>
    %28 = vector.shape_cast %27 : vector<1x8x128xf32> to vector<8x128xf32>
    %29 = vector.shape_cast %26 : vector<8x128xf32> to vector<1x8x128xf32>
    %cst_14 = arith.constant dense<0.000000e+00> : vector<8x128xf32>
    %30 = vector.multi_reduction <add>, %29, %cst_14 [0] : vector<1x8x128xf32> to vector<8x128xf32>
    %31 = arith.addf %28, %30 : vector<8x128xf32>
    %c0_15 = arith.constant 0 : index
    %c0_16 = arith.constant 0 : index
    %c0_17 = arith.constant 0 : index
    %32 = vector.load %arg4[%c0_15, %c0_16, %c0_17] : memref<1x8x128xf32, #tpu.memory_space<vmem>>, vector<1x8x128xf32>
    %33 = vector.shape_cast %32 : vector<1x8x128xf32> to vector<8x128xf32>
    %34 = vector.shape_cast %31 : vector<8x128xf32> to vector<1x8x128xf32>
    tpu.vector_store %arg4[%c0_15, %c0_16, %c0_17], %34 {strides = array<i32>} : memref<1x8x128xf32, #tpu.memory_space<vmem>>, vector<1x8x128xf32>,
    return
  }
  func.func @transform_0(%arg0: i32, %arg1: i32) -> (i32, i32) {
    %c1_i32 = arith.constant 1 : i32
    %0 = arith.muli %arg0, %c1_i32 : i32
    %1 = arith.addi %0, %arg1 : i32
    %c0_i32 = arith.constant 0 : i32
    %c0_i32_0 = arith.constant 0 : i32
    return %1, %c0_i32 : i32, i32
  }
  func.func @transform_1(%arg0: i32, %arg1: i32) -> (i32, i32) {
    %c1_i32 = arith.constant 1 : i32
    %0 = arith.muli %arg0, %c1_i32 : i32
    %1 = arith.addi %0, %arg1 : i32
    %c0_i32 = arith.constant 0 : i32
    %c0_i32_0 = arith.constant 0 : i32
    return %1, %c0_i32 : i32, i32
  }
  func.func @transform_2(%arg0: i32, %arg1: i32) -> (i32, i32, i32) {
    %c0_i32 = arith.constant 0 : i32
    %c0_i32_0 = arith.constant 0 : i32
    %c0_i32_1 = arith.constant 0 : i32
    return %arg0, %c0_i32, %c0_i32_0 : i32, i32, i32
  }
}

</mosaic_0001>

<llo_original>
// kernel: tpu_custom_call.1
$region0: #{tpu_custom_call.1}
  #allocation0 [shape = 'u32[]', space=smem, size = 0x4, offset = 0x4, fixed_abs, tag = 'smem constant byte address 0x4 - core index']
  #allocation1 [shape = 'u32[72,128]{1,0:T(1,128)}', space=vmem, size = 0x9000, scoped, tag = 'internal scratch']
  %s0 = inlined_call_operand.hbm [shape: f32[16,128], index: 0, kind: input, shape index: {}]
  %s1 = inlined_call_operand.hbm [shape: f32[16,128], index: 1, kind: input, shape index: {}]
  %s2 = inlined_call_operand.hbm [shape: f32[2,8,128], index: 2, kind: output, shape index: {}]
  %s3 = sld [smem:[#allocation0]]
  $region53: #{tpu_custom_call.1} parent=0
    _
  %s5 = ssub.s32 1, %s3
  %s6 = scalar_select 0, %s5, %s3
  $region1: #{tpu_custom_call.1} parent=0
    #allocation2 [shape = 'u8[8192]{0}', space=vmem, size = 0x2000, scoped, tag = 'input window, operand 0']
    #allocation3 [shape = 's32[2]{0}', space=sflag, size = 0x8, scoped, tag = 'scoped memory for tpu_custom_call.1']
    #allocation4 [shape = 's32[2]{0}', space=sflag, size = 0x8, scoped, tag = 'scoped memory for tpu_custom_call.1']
    #allocation5 [shape = 'u8[8192]{0}', space=vmem, size = 0x2000, scoped, tag = 'input window, operand 1']
    #allocation6 [shape = 's32[2]{0}', space=sflag, size = 0x8, scoped, tag = 'scoped memory for tpu_custom_call.1']
    #allocation7 [shape = 'u8[8192]{0}', space=vmem, size = 0x2000, scoped, tag = 'output window, operand 0']
    %7 = vsyncpa [#allocation3], 0
    %s8 = scalar_lea.sflag [#allocation3], 1
    %9 = vsyncpa %s8, 0
    %10 = vsyncpa [#allocation6], 0
    %s11 = scalar_lea.sflag [#allocation6], 1
    %12 = vsyncpa %s11, 0
    %13 = vsyncpa [#allocation4], 0
    %s14 = scalar_lea.sflag [#allocation4], 1
    %15 = vsyncpa %s14, 0
    loop: start=0, step=1, limit=4
    $region2: #{tpu_custom_call.1} parent=1 // loop_pre_header
      _
    $region3: #{tpu_custom_call.1} parent=1 // loop_header
      %s17 = sphi 0, %s21
      %p18 = scmp.ge.s32.totalorder %s17, 4
      %s24 = sphi 0, %s36
      %s25 = sphi 0, %s32
      %s26 = sphi 0, %s24
      %s27 = sphi 0, %s25
      %s28 = sphi 0, %s26
      %s29 = sphi 0, %s27
      %s41 = sphi 0, %s43
      %s44 = sphi 0, %s41
      %s45 = sphi 0, %s44
      %s61 = sphi 0, %s45
      %s69 = sphi 0, %s71
      %s72 = sphi 0, %s69
      %s73 = sphi 0, %s72
      %s89 = sphi 0, %s73
      %s95 = sphi 0, %s97
      %s98 = sphi 0, %s95
      %s99 = sphi 0, %s98
      %s115 = sphi 0, %s99
    $region4: #{tpu_custom_call.1} parent=1 // loop_header_branch
      %20 = sbr.rel (%p18) target = $region8
    $region5: #{tpu_custom_call.1} parent=1 // loop_body
      %s22 = ssub.s32 %s17, 1
      %s23 = ssub.s32 %s17, 2
      %s30 = sadd.s32 1, %s25
      %p31 = scmp.ge.s32.totalorder %s30, 1
      %s32 = scalar_select %p31, 0, %s30
      %s33 = sadd.s32 1, %s24
      %s34 = scalar_select %p31, %s33, %s24
      %p35 = scmp.ge.s32.totalorder %s34, 2
      %s36 = scalar_select %p35, 0, %s34
      %s37 = sadd.s32 %s24, %s25
      %s38 = sadd.s32 %s36, %s32
      %s39 = ssub.s32 %s37, %s38
      %p40 = scmp.eq.s32.totalorder %s39, 0
      %s42 = sadd.s32 %s41, 1
      %s43 = scalar_select %p40, %s41, %s42
      %p46 = pneg %p40
      %p47 = scmp.eq.s32.totalorder %s17, 1
      %p48 = por %p46, %p47
      %p49 = scmp.ne.s32.totalorder %s41, %s44
      %p50 = scmp.eq.s32.totalorder %s17, 0
      %p51 = por %p49, %p50
      %p52 = scmp.ne.s32.totalorder %s41, %s44
      %p53 = scmp.eq.s32.totalorder %s22, 1
      %p54 = por %p52, %p53
      %p55 = scmp.ne.s32.totalorder %s44, %s45
      %p56 = scmp.eq.s32.totalorder %s22, 0
      %p57 = por %p55, %p56
      %p58 = scmp.ne.s32.totalorder %s44, %s45
      %p59 = scmp.eq.s32.totalorder %s23, 1
      %p60 = por %p58, %p59
      %p62 = scmp.ne.s32.totalorder %s45, %s61
      %p63 = scmp.eq.s32.totalorder %s23, 0
      %p64 = por %p62, %p63
      %s65 = sadd.s32 %s24, %s25
      %s66 = sadd.s32 %s36, %s32
      %s67 = ssub.s32 %s65, %s66
      %p68 = scmp.eq.s32.totalorder %s67, 0
      %s70 = sadd.s32 %s69, 1
      %s71 = scalar_select %p68, %s69, %s70
      %p74 = pneg %p68
      %p75 = scmp.eq.s32.totalorder %s17, 1
      %p76 = por %p74, %p75
      %p77 = scmp.ne.s32.totalorder %s69, %s72
      %p78 = scmp.eq.s32.totalorder %s17, 0
      %p79 = por %p77, %p78
      %p80 = scmp.ne.s32.totalorder %s69, %s72
      %p81 = scmp.eq.s32.totalorder %s22, 1
      %p82 = por %p80, %p81
      %p83 = scmp.ne.s32.totalorder %s72, %s73
      %p84 = scmp.eq.s32.totalorder %s22, 0
      %p85 = por %p83, %p84
      %p86 = scmp.ne.s32.totalorder %s72, %s73
      %p87 = scmp.eq.s32.totalorder %s23, 1
      %p88 = por %p86, %p87
      %p90 = scmp.ne.s32.totalorder %s73, %s89
      %p91 = scmp.eq.s32.totalorder %s23, 0
      %p92 = por %p90, %p91
      %s93 = ssub.s32 %s24, %s36
      %p94 = scmp.eq.s32.totalorder %s93, 0
      %s96 = sadd.s32 %s95, 1
      %s97 = scalar_select %p94, %s95, %s96
      %p100 = pneg %p94
      %p101 = scmp.eq.s32.totalorder %s17, 1
      %p102 = por %p100, %p101
      %p103 = scmp.ne.s32.totalorder %s95, %s98
      %p104 = scmp.eq.s32.totalorder %s17, 0
      %p105 = por %p103, %p104
      %p106 = scmp.ne.s32.totalorder %s95, %s98
      %p107 = scmp.eq.s32.totalorder %s22, 1
      %p108 = por %p106, %p107
      %p109 = scmp.ne.s32.totalorder %s98, %s99
      %p110 = scmp.eq.s32.totalorder %s22, 0
      %p111 = por %p109, %p110
      %p112 = scmp.ne.s32.totalorder %s98, %s99
      %p113 = scmp.eq.s32.totalorder %s23, 1
      %p114 = por %p112, %p113
      %p116 = scmp.ne.s32.totalorder %s99, %s115
      %p117 = scmp.eq.s32.totalorder %s23, 0
      %p118 = por %p116, %p117
      %p119 = scmp.le.s32.totalorder 1, %s17
      %p120 = scmp.lt.s32.totalorder %s17, 3
      %p121 = pnand %p119, %p120
      %p122 = pneg %p121
      // Predicated region
      $region9: #{tpu_custom_call.1} parent=5 // pred_check
        _
      $region10: #{tpu_custom_call.1} parent=5 // pred_check_branch
        %124 = sbr.rel (%p121) target = $region12
      $region11: #{tpu_custom_call.1} parent=5 // pred_region
        %s125 = ssub.s32 %s17, 1
      $region12: #{tpu_custom_call.1} parent=5 // pred_fallthru
        _
      %p126 = scmp.lt.s32.totalorder %s17, 2
      // Predicated region
      $region13: #{tpu_custom_call.1} parent=5 // pred_check
        %p127 = pneg %p126
      $region14: #{tpu_custom_call.1} parent=5 // pred_check_branch
        %129 = sbr.rel (%p127) target = $region16
      $region15: #{tpu_custom_call.1} parent=5 // pred_region
        // Predicated region
        $region17: #{tpu_custom_call.1} parent=15 // pred_check
          %p130 = pneg %p51
        $region18: #{tpu_custom_call.1} parent=15 // pred_check_branch
          %132 = sbr.rel (%p130) target = $region20
        $region19: #{tpu_custom_call.1} parent=15 // pred_region
          %s133 = sand.u32 %s41, 1
          %s134 = scalar_lea.sflag [#allocation3], %s133
          %s135 = sand.u32 %s41, 1
          %s136 = smul.addr %s135, 8
          %s137 = scalar_lea.vmem [#allocation2], %s136
          %s138 = sadd.s32 %s24, %s25
          %140 = vsyncadd %s134, 0
          %s141 = smul.addr %s138, 8
          %s142 = scalar_lea.hbm %s0, %s141
          %s144 = sshll.u32 %s142, 4
          %s145 = int_to_ptr.hbm [resolvable:$true] %s144
          %s146 = sshll.u32 %s137, 4
          %s147 = int_to_ptr.vmem [resolvable:$true] %s146
          %149 = dma.hbm_to_vmem [thread:$0]  %s145, 128, %s147, %s134
        $region20: #{tpu_custom_call.1} parent=15 // pred_fallthru
          _
        // Predicated region
        $region21: #{tpu_custom_call.1} parent=15 // pred_check
          %p150 = pneg %p79
        $region22: #{tpu_custom_call.1} parent=15 // pred_check_branch
          %152 = sbr.rel (%p150) target = $region24
        $region23: #{tpu_custom_call.1} parent=15 // pred_region
          %s153 = sand.u32 %s69, 1
          %s154 = scalar_lea.sflag [#allocation6], %s153
          %s155 = sand.u32 %s69, 1
          %s156 = smul.addr %s155, 8
          %s157 = scalar_lea.vmem [#allocation5], %s156
          %s158 = sadd.s32 %s24, %s25
          %160 = vsyncadd %s154, 0
          %s161 = smul.addr %s158, 8
          %s162 = scalar_lea.hbm %s1, %s161
          %s164 = sshll.u32 %s162, 4
          %s165 = int_to_ptr.hbm [resolvable:$true] %s164
          %s166 = sshll.u32 %s157, 4
          %s167 = int_to_ptr.vmem [resolvable:$true] %s166
          %169 = dma.hbm_to_vmem [thread:$0]  %s165, 128, %s167, %s154
        $region24: #{tpu_custom_call.1} parent=15 // pred_fallthru
          _
      $region16: #{tpu_custom_call.1} parent=5 // pred_fallthru
        _
      %p170 = scmp.le.s32.totalorder 1, %s17
      %p171 = scmp.lt.s32.totalorder %s17, 3
      %p172 = pnand %p170, %p171
      %p173 = pneg %p172
      // Predicated region
      $region25: #{tpu_custom_call.1} parent=5 // pred_check
        _
      $region26: #{tpu_custom_call.1} parent=5 // pred_check_branch
        %175 = sbr.rel (%p172) target = $region28
      $region27: #{tpu_custom_call.1} parent=5 // pred_region
        %s176 = ssub.s32 %s17, 1
        %s177 = sand.u32 %s44, 1
        %s178 = scalar_lea.sflag [#allocation3], %s177
        %s179 = sand.u32 %s44, 1
        %s180 = smul.addr %s179, 8
        %s181 = scalar_lea.vmem [#allocation2], %s180
        // Predicated region
        $region29: #{tpu_custom_call.1} parent=27 // pred_check
          %p182 = pneg %p57
        $region30: #{tpu_custom_call.1} parent=27 // pred_check_branch
          %184 = sbr.rel (%p182) target = $region32
        $region31: #{tpu_custom_call.1} parent=27 // pred_region
          %186 = dma.done %s178, 128
        $region32: #{tpu_custom_call.1} parent=27 // pred_fallthru
          _
        %s187 = sand.u32 %s72, 1
        %s188 = scalar_lea.sflag [#allocation6], %s187
        %s189 = sand.u32 %s72, 1
        %s190 = smul.addr %s189, 8
        %s191 = scalar_lea.vmem [#allocation5], %s190
        // Predicated region
        $region33: #{tpu_custom_call.1} parent=27 // pred_check
          %p192 = pneg %p85
        $region34: #{tpu_custom_call.1} parent=27 // pred_check_branch
          %194 = sbr.rel (%p192) target = $region36
        $region35: #{tpu_custom_call.1} parent=27 // pred_region
          %196 = dma.done %s188, 128
        $region36: #{tpu_custom_call.1} parent=27 // pred_fallthru
          _
        %s197 = sand.u32 %s44, 1
        %s198 = scalar_lea.sflag [#allocation3], %s197
        %s199 = sand.u32 %s44, 1
        %s200 = smul.addr %s199, 8
        %s201 = scalar_lea.vmem [#allocation2], %s200
        %p202 = pneg %p57
        %p203 = pneg %p54
        %s204 = sand.u32 %s72, 1
        %s205 = scalar_lea.sflag [#allocation6], %s204
        %s206 = sand.u32 %s72, 1
        %s207 = smul.addr %s206, 8
        %s208 = scalar_lea.vmem [#allocation5], %s207
        %p209 = pneg %p85
        %p210 = pneg %p82
        %p211 = pneg %p111
        %p212 = pneg %p108
        %s213 = sand.u32 %s98, 1
        %s214 = scalar_lea.sflag [#allocation4], %s213
        %s215 = sand.u32 %s98, 1
        %s216 = smul.addr %s215, 8
        %s217 = scalar_lea.vmem [#allocation7], %s216
        %s218 = sadd.s32 %s26, %s27
        %s219 = sadd.s32 %s26, %s27
        %p220 = scmp.eq.s32.totalorder %s27, 0
        // Predicated region
        $region37: #{tpu_custom_call.1} parent=27 // pred_check
          %p221 = pneg %p220
        $region38: #{tpu_custom_call.1} parent=27 // pred_check_branch
          %223 = sbr.rel (%p221) target = $region40
        $region39: #{tpu_custom_call.1} parent=27 // pred_region
          %224 = vst [vmem:[%s217] sm:$0xff] 0.0
        $region40: #{tpu_custom_call.1} parent=27 // pred_fallthru
          _
        %v225 = vld [vmem:[%s181] sm:$0xff]
        %v226 = vld [vmem:[%s191] sm:$0xff]
        %v227 = vmax.f32 %v225, 0.0
        %v228 = vmul.f32 %v225, %v226
        %v229 = vsub.f32 %v227, %v228
        %v230 = vand.u32 2147483647, %v225
        %v231 = vsub.f32 0.0, %v230
        %v232 = vmul.f32 %v231, 1.442695
        %v233 = vpow.pop %v232
        %v234 = vadd.f32 %v233, 1.0
        %v235 = vlog2.pop %v234
        %v236 = vmul.f32 %v235, 0.6931472
        %v237 = vmul.f32 -0.5, %v233
        %v238 = vadd.f32 %v237, 1.0
        %v239 = vmul.f32 %v238, %v233
        %v240 = vand.u32 2147483647, %v233
        %vm241 = vcmp.lt.f32.partialorder %v240, 0.0004427343
        %v242 = vsel %vm241, %v239, %v236
        %v243 = vadd.f32 %v229, %v242
        %vm244 = vcmp.eq.f32.partialorder %v226, 1.0
        %v245 = vsel %vm244, 1.8, 1.0
        %v246 = vmul.f32 %v243, %v245
        %v247 = vld [vmem:[%s217] sm:$0xff]
        %v248 = vadd.f32 %v246, 0.0
        %v249 = vadd.f32 %v247, %v248
        %250 = vst [vmem:[%s217] sm:$0xff] %v249
        %s251 = sand.u32 %s98, 1
        %s252 = scalar_lea.sflag [#allocation4], %s251
        %s253 = sand.u32 %s98, 1
        %s254 = smul.addr %s253, 8
        %s255 = scalar_lea.vmem [#allocation7], %s254
        // Predicated region
        $region41: #{tpu_custom_call.1} parent=27 // pred_check
          %p256 = pneg %p108
        $region42: #{tpu_custom_call.1} parent=27 // pred_check_branch
          %258 = sbr.rel (%p256) target = $region44
        $region43: #{tpu_custom_call.1} parent=27 // pred_region
          %260 = vsyncadd %s252, 0
          %s261 = smul.addr %s26, 8
          %s262 = scalar_lea.hbm %s2, %s261
          %s264 = sshll.u32 %s255, 4
          %s265 = int_to_ptr.vmem [resolvable:$true] %s264
          %s266 = sshll.u32 %s262, 4
          %s267 = int_to_ptr.hbm [resolvable:$true] %s266
          %269 = dma.vmem_to_hbm [thread:$0]  %s265, 128, %s267, %s252
        $region44: #{tpu_custom_call.1} parent=27 // pred_fallthru
          _
      $region28: #{tpu_custom_call.1} parent=5 // pred_fallthru
        _
      %p270 = scmp.le.s32.totalorder 2, %s17
      // Predicated region
      $region45: #{tpu_custom_call.1} parent=5 // pred_check
        %p271 = pneg %p270
      $region46: #{tpu_custom_call.1} parent=5 // pred_check_branch
        %273 = sbr.rel (%p271) target = $region48
      $region47: #{tpu_custom_call.1} parent=5 // pred_region
        %s274 = ssub.s32 %s17, 2
        // Predicated region
        $region49: #{tpu_custom_call.1} parent=47 // pred_check
          %p275 = pneg %p114
        $region50: #{tpu_custom_call.1} parent=47 // pred_check_branch
          %277 = sbr.rel (%p275) target = $region52
        $region51: #{tpu_custom_call.1} parent=47 // pred_region
          %s278 = sand.u32 %s99, 1
          %s279 = scalar_lea.sflag [#allocation4], %s278
          %s280 = sand.u32 %s99, 1
          %s281 = smul.addr %s280, 8
          %s282 = scalar_lea.vmem [#allocation7], %s281
          %284 = dma.done %s279, 128
        $region52: #{tpu_custom_call.1} parent=47 // pred_fallthru
          _
      $region48: #{tpu_custom_call.1} parent=5 // pred_fallthru
        _
    $region6: #{tpu_custom_call.1} parent=1 // loop_footer
      %s21 = sadd.s32 1, %s17
    $region7: #{tpu_custom_call.1} parent=1 // loop_footer_branch
      %16 = sbr.rel target = $region3
    $region8: #{tpu_custom_call.1} parent=1 // loop_exit
      _
    %285 = vsyncpa [#allocation3], 1
    %s286 = scalar_lea.sflag [#allocation3], 1
    %287 = vsyncpa %s286, 1
    %288 = vsyncpa [#allocation6], 1
    %s289 = scalar_lea.sflag [#allocation6], 1
    %290 = vsyncpa %s289, 1
    %291 = vsyncpa [#allocation4], 1
    %s292 = scalar_lea.sflag [#allocation4], 1
    %293 = vsyncpa %s292, 1

</llo_original>
